<compile_context>
chip_gen: v5e
topology: v5e:2x2
jax: 0.10.0
libtpu: 0.0.40
codegen_flags: <defaults>
</compile_context>

<pallas_src>
import jax
import jax.numpy as jnp
from jax.experimental import pallas as pl
from jax.experimental.pallas import tpu as pltpu


# ----------------------------- Pallas kernel ------------------------------
def _fused_align_kernel(x_ref, y_ref, wxt_ref, wyt_ref, o_ref):
    # x_ref  : (tm, F)   streamed row tile of X (compute dtype)
    # y_ref  : (tm, T)   streamed row tile of Y
    # wxt_ref: (F, D)    X weight pre-transposed in wrapper, VMEM-resident
    # wyt_ref: (T, D)    Y weight pre-transposed in wrapper, VMEM-resident
    # o_ref  : (2D, tm)  transposed output slab [X_embed^T ; Y_embed^T]:
    #                    the large tm axis is the 128-lane dim -> one
    #                    full-width unmasked store per grid step.
    xe = jnp.dot(x_ref[...], wxt_ref[...], preferred_element_type=jnp.float32)
    ye = jnp.dot(y_ref[...], wyt_ref[...], preferred_element_type=jnp.float32)
    e = jnp.concatenate([jnp.tanh(xe), jnp.tanh(ye)], axis=-1)   # (tm, 2D) f32
    o_ref[...] = e.T.astype(o_ref.dtype)                          # single lane-dense store


# ------------------------------ wrapper ------------------------------------
def alignment_net_forward(X, Y, wx, wy, *, use_bf16=False, row_tile=None,
                          force_pallas=False):
    """Matches AlignmentNet.forward: returns (X_embed, Y_embed).

    X: (N, F), Y: (N, T); wx: (D, F), wy: (D, T) in PyTorch Linear layout.
    """
    N, F = X.shape
    Ny, T = Y.shape
    D = wx.shape[0]
    assert Ny == N and wx.shape == (D, F) and wy.shape == (D, T)

    # Small-problem fast path: custom-call launch + DMA overhead dwarfs the
    # work below a few vreg tiles; fused XLA wins outright there.
    if not force_pallas and N * (F + T) < (1 << 16):
        return jnp.tanh(X @ wx.T), jnp.tanh(Y @ wy.T)

    out_dtype = X.dtype
    compute_dtype = jnp.bfloat16 if use_bf16 else X.dtype
    in_itemsize = jnp.dtype(compute_dtype).itemsize
    out_itemsize = jnp.dtype(out_dtype).itemsize

    # One-time tiny weight transposes to canonical (K, N) MXU layout; the
    # kernel never re-layouts the RHS.
    wxt = wx.T.astype(compute_dtype)      # (F, D)
    wyt = wy.T.astype(compute_dtype)      # (T, D)
    Xc = X.astype(compute_dtype)
    Yc = Y.astype(compute_dtype)

    # ---- Row tile sized from per-generation VMEM (v5e/v6e 128 MiB physical,
    # v7x only 64 MiB); leave headroom for double-buffered I/O + compiler temps.
    try:
        vmem_cap = int(pltpu.get_tpu_info().vmem_capacity_bytes)
    except Exception:  # be conservative if introspection is unavailable
        vmem_cap = 64 << 20
    budget = min(vmem_cap // 2, 64 << 20)
    weight_bytes = 2 * D * (F + T) * in_itemsize                      # resident
    row_bytes = 2 * (in_itemsize * (F + T) + out_itemsize * 2 * D)    # dbl-buffered I/O
    tm_cap = max(128, (budget - weight_bytes) // row_bytes)
    tm = int(row_tile) if row_tile is not None else int(min(tm_cap, 8192))
    # Keep >= 2 grid steps for large N (uses both v7x TensorCores, enables
    # input/output pipelining); no effect on v5e/v6e correctness.
    if N > 256:
        tm = min(tm, ((pl.cdiv(N, 2) + 127) // 128) * 128)
    tm = max(128, (tm // 128) * 128)   # output lane-dim block must be a multiple of 128
    if tm >= N:
        tm = N                          # single full-extent block
    grid = (pl.cdiv(N, tm),)            # ragged last block: Pallas masks edge writes

    need = 2 * tm * (in_itemsize * (F + T) + out_itemsize * 2 * D) + weight_bytes
    vmem_limit = int(min(vmem_cap - (2 << 20), max(need + (2 << 20), 16 << 20)))

    cost = pl.CostEstimate(
        flops=2 * N * D * (F + T),
        transcendentals=2 * N * D,
        bytes_accessed=(in_itemsize * (N * (F + T) + D * (F + T))
                        + out_itemsize * N * 2 * D),
    )

    out = pl.pallas_call(
        _fused_align_kernel,
        out_shape=jax.ShapeDtypeStruct((2 * D, N), out_dtype),
        grid=grid,
        in_specs=[
            pl.BlockSpec((tm, F), lambda i: (i, 0)),
            pl.BlockSpec((tm, T), lambda i: (i, 0)),
            pl.BlockSpec((F, D), lambda i: (0, 0)),   # weights stay VMEM-resident
            pl.BlockSpec((T, D), lambda i: (0, 0)),
        ],
        out_specs=pl.BlockSpec((2 * D, tm), lambda i: (0, i)),
        compiler_params=pltpu.CompilerParams(
            dimension_semantics=("parallel",),
            vmem_limit_bytes=vmem_limit,
        ),
        cost_estimate=cost,
    )(Xc, Yc, wxt, wyt)

    # Tiny (2D, N) -> (N, D) transposes on the small result; fusable downstream.
    X_embed = out[:D, :].T
    Y_embed = out[D:, :].T
    return X_embed, Y_embed


# --------------------------- parameter setup ------------------------------
def make_params(key, n_features, n_targets, n_low_D):
    kx, ky = jax.random.split(key)

    # linear_X: raw weight (n_low_D, n_features), Sphere(dim=-1) => unit rows.
    wx_raw = jax.random.normal(kx, (n_low_D, n_features), dtype=jnp.float32)
    wx = wx_raw / jnp.linalg.norm(wx_raw, axis=-1, keepdims=True)

    # linear_Y: orthogonal parametrization (orthonormal rows, n_low_D <= n_targets)
    # then Sphere(dim=-1), numerically a no-op on orthonormal rows.
    wy_raw = jax.random.normal(ky, (n_targets, n_low_D), dtype=jnp.float32)
    q, _ = jnp.linalg.qr(wy_raw)          # (n_targets, n_low_D), orthonormal cols
    wy = q.T                              # (n_low_D, n_targets), orthonormal rows
    wy = wy / jnp.linalg.norm(wy, axis=-1, keepdims=True)
    return wx, wy


# ------------------------------- main -------------------------------------
if __name__ == "__main__":
    n_samples, n_features, n_targets, n_low_D = 8, 32, 16, 8

    key = jax.random.PRNGKey(0)
    kp, kx, ky = jax.random.split(key, 3)

    wx, wy = make_params(kp, n_features, n_targets, n_low_D)
    X = jax.random.normal(kx, (n_samples, n_features), dtype=jnp.float32)
    Y = jax.random.normal(ky, (n_samples, n_targets), dtype=jnp.float32)

    # (1) Pallas path forced at the demo size (single block) + f32 reference.
    X_embed, Y_embed = alignment_net_forward(X, Y, wx, wy, force_pallas=True)
    X_embed = jax.block_until_ready(X_embed)
    Y_embed = jax.block_until_ready(Y_embed)
    X_ref = jnp.tanh(X @ wx.T)
    Y_ref = jnp.tanh(Y @ wy.T)
    assert X_embed.shape == (n_samples, n_low_D)
    assert Y_embed.shape == (n_samples, n_low_D)
    assert jnp.allclose(X_embed, X_ref, atol=1e-5, rtol=1e-5)
    assert jnp.allclose(Y_embed, Y_ref, atol=1e-5, rtol=1e-5)

    # (2) Multi-block ragged grid (no host padding): N=300, row_tile=128 -> 3 steps,
    # last block partially out of bounds (Pallas masks the edge writes).
    N2 = 300
    kx2, ky2 = jax.random.split(jax.random.PRNGKey(1))
    X2 = jax.random.normal(kx2, (N2, n_features), dtype=jnp.float32)
    Y2 = jax.random.normal(ky2, (N2, n_targets), dtype=jnp.float32)
    Xe2, Ye2 = alignment_net_forward(X2, Y2, wx, wy, force_pallas=True, row_tile=128)
    Xe2 = jax.block_until_ready(Xe2)
    Ye2 = jax.block_until_ready(Ye2)
    assert jnp.allclose(Xe2, jnp.tanh(X2 @ wx.T), atol=1e-5, rtol=1e-5)
    assert jnp.allclose(Ye2, jnp.tanh(Y2 @ wy.T), atol=1e-5, rtol=1e-5)

    # TODO(synk): fit/predict/score (Adam training loop, per-step parametrization
    # re-projection) and cost_func are host-side training logic, not translated.
    print("KERNEL_OK")
</pallas_src>

<mosaic_0001>
module attributes {stable_mosaic.version = 11 : i64} {
  func.func @_fused_align_kernel(%arg0: i32, %arg1: memref<8x32xf32, #tpu.memory_space<vmem>>, %arg2: memref<8x16xf32, #tpu.memory_space<vmem>>, %arg3: memref<32x8xf32, #tpu.memory_space<vmem>>, %arg4: memref<16x8xf32, #tpu.memory_space<vmem>>, %arg5: memref<16x8xf32, #tpu.memory_space<vmem>>) attributes {dimension_semantics = [#tpu.dimension_semantics<parallel>], iteration_bounds = array<i64: 1>, scalar_prefetch = 0 : i64, scratch_operands = 0 : i64, tpu.core_type = #tpu.core_type<tc>, window_params = [{transform_indices = @transform_0, window_bounds = array<i64: 8, 32>}, {transform_indices = @transform_1, window_bounds = array<i64: 8, 16>}, {pipeline_mode = #tpu.pipeline_mode<synchronous>, transform_indices = @transform_2, window_bounds = array<i64: 32, 8>}, {pipeline_mode = #tpu.pipeline_mode<synchronous>, transform_indices = @transform_3, window_bounds = array<i64: 16, 8>}, {transform_indices = @transform_4, window_bounds = array<i64: 16, 8>}]} {
    %c0 = arith.constant 0 : index
    %c0_0 = arith.constant 0 : index
    %0 = vector.load %arg1[%c0, %c0_0] : memref<8x32xf32, #tpu.memory_space<vmem>>, vector<8x32xf32>
    %c0_1 = arith.constant 0 : index
    %c0_2 = arith.constant 0 : index
    %1 = vector.load %arg3[%c0_1, %c0_2] : memref<32x8xf32, #tpu.memory_space<vmem>>, vector<32x8xf32>
    %cst = arith.constant dense<0.000000e+00> : vector<8x8xf32>
    %2 = tpu.matmul %0, %1, %cst {dimension_numbers = #tpu.dot_dimension_numbers<[1], [0], [0], [1], [0, 0, 1, 1], [], []>} : vector<8x32xf32>, vector<32x8xf32>, vector<8x8xf32> -> vector<8x8xf32>
    %c0_3 = arith.constant 0 : index
    %c0_4 = arith.constant 0 : index
    %3 = vector.load %arg2[%c0_3, %c0_4] : memref<8x16xf32, #tpu.memory_space<vmem>>, vector<8x16xf32>
    %c0_5 = arith.constant 0 : index
    %c0_6 = arith.constant 0 : index
    %4 = vector.load %arg4[%c0_5, %c0_6] : memref<16x8xf32, #tpu.memory_space<vmem>>, vector<16x8xf32>
    %cst_7 = arith.constant dense<0.000000e+00> : vector<8x8xf32>
    %5 = tpu.matmul %3, %4, %cst_7 {dimension_numbers = #tpu.dot_dimension_numbers<[1], [0], [0], [1], [0, 0, 1, 1], [], []>} : vector<8x16xf32>, vector<16x8xf32>, vector<8x8xf32> -> vector<8x8xf32>
    %6 = math.tanh %2 : vector<8x8xf32>
    %7 = math.tanh %5 : vector<8x8xf32>
    %8 = tpu.concatenate %6, %7 in 1 : vector<8x8xf32>, vector<8x8xf32> -> vector<8x16xf32>
    %9 = tpu.transpose %8, [1, 0] : vector<8x16xf32> -> vector<16x8xf32>
    %c0_8 = arith.constant 0 : index
    %c0_9 = arith.constant 0 : index
    %10 = vector.load %arg5[%c0_8, %c0_9] : memref<16x8xf32, #tpu.memory_space<vmem>>, vector<16x8xf32>
    tpu.vector_store %arg5[%c0_8, %c0_9], %9 {strides = array<i32>} : memref<16x8xf32, #tpu.memory_space<vmem>>, vector<16x8xf32>,
    return
  }
  func.func @transform_0(%arg0: i32) -> (i32, i32) {
    %c0_i32 = arith.constant 0 : i32
    %c0_i32_0 = arith.constant 0 : i32
    return %arg0, %c0_i32 : i32, i32
  }
  func.func @transform_1(%arg0: i32) -> (i32, i32) {
    %c0_i32 = arith.constant 0 : i32
    %c0_i32_0 = arith.constant 0 : i32
    return %arg0, %c0_i32 : i32, i32
  }
  func.func @transform_2(%arg0: i32) -> (i32, i32) {
    %c0_i32 = arith.constant 0 : i32
    %c0_i32_0 = arith.constant 0 : i32
    %c0_i32_1 = arith.constant 0 : i32
    return %c0_i32, %c0_i32_0 : i32, i32
  }
  func.func @transform_3(%arg0: i32) -> (i32, i32) {
    %c0_i32 = arith.constant 0 : i32
    %c0_i32_0 = arith.constant 0 : i32
    %c0_i32_1 = arith.constant 0 : i32
    return %c0_i32, %c0_i32_0 : i32, i32
  }
  func.func @transform_4(%arg0: i32) -> (i32, i32) {
    %c0_i32 = arith.constant 0 : i32
    %c0_i32_0 = arith.constant 0 : i32
    return %c0_i32, %arg0 : i32, i32
  }
}

</mosaic_0001>

<llo_original>
// kernel: tpu_custom_call.1
$region0: #{tpu_custom_call.1}
  #allocation0 [shape = 'u32[]', space=smem, size = 0x4, offset = 0x4, fixed_abs, tag = 'smem constant byte address 0x4 - core index']
  #allocation1 [shape = 'u32[72,128]{1,0:T(1,128)}', space=vmem, size = 0x9000, scoped, tag = 'internal scratch']
  %s0 = inlined_call_operand.vmem [shape: f32[8,32], index: 0, kind: input, shape index: {}]
  %s1 = inlined_call_operand.vmem [shape: f32[8,16], index: 1, kind: input, shape index: {}]
  %s2 = inlined_call_operand.vmem [shape: f32[32,8], index: 2, kind: input, shape index: {}]
  %s3 = inlined_call_operand.vmem [shape: f32[16,8], index: 3, kind: input, shape index: {}]
  %s4 = inlined_call_operand.vmem [shape: f32[16,8], index: 4, kind: output, shape index: {}]
  %s5 = sld [smem:[#allocation0]]
  $region26: #{tpu_custom_call.1} parent=0
    _
  %s7 = ssub.s32 1, %s5
  %s8 = scalar_select 0, %s7, %s5
  // Predicated region
  $region2: #{tpu_custom_call.1} parent=0 // pred_check
    _
  $region3: #{tpu_custom_call.1} parent=0 // pred_check_branch
    %10 = sbr.rel (0) target = $region5
  $region4: #{tpu_custom_call.1} parent=0 // pred_region
    _
  $region5: #{tpu_custom_call.1} parent=0 // pred_fallthru
    _
  // Predicated region
  $region6: #{tpu_custom_call.1} parent=0 // pred_check
    _
  $region7: #{tpu_custom_call.1} parent=0 // pred_check_branch
    %12 = sbr.rel (0) target = $region9
  $region8: #{tpu_custom_call.1} parent=0 // pred_region
    _
  $region9: #{tpu_custom_call.1} parent=0 // pred_fallthru
    _
  // Predicated region
  $region10: #{tpu_custom_call.1} parent=0 // pred_check
    _
  $region11: #{tpu_custom_call.1} parent=0 // pred_check_branch
    %14 = sbr.rel (0) target = $region13
  $region12: #{tpu_custom_call.1} parent=0 // pred_region
    _
  $region13: #{tpu_custom_call.1} parent=0 // pred_fallthru
    _
  // Predicated region
  $region14: #{tpu_custom_call.1} parent=0 // pred_check
    _
  $region15: #{tpu_custom_call.1} parent=0 // pred_check_branch
    %16 = sbr.rel (0) target = $region17
  $region16: #{tpu_custom_call.1} parent=0 // pred_region
    _
  $region17: #{tpu_custom_call.1} parent=0 // pred_fallthru
    _
  %v17 = vld [vmem:[%s0] sm:$0xff]
  %v18 = vld [vmem:[%s2] sm:$0xff]
  %v19 = vld [vmem:[%s2 + $0x8] sm:$0xff]
  %v20 = vld [vmem:[%s2 + $0x10] sm:$0xff]
  %v21 = vld [vmem:[%s2 + $0x18] sm:$0xff]
  %vm22 = vcmask 261120
  %v24 = vsel %vm22, %v17, 0
  %26 = vmatpush.msra.mxu0 0.0
  %27 = vmatpush.msra.mxu0 0.0
  %28 = vmatpush.msra.mxu0 0.0
  %29 = vmatpush.msra.mxu0 0.0
  %30 = vmatpush.msra.mxu0 0.0
  %31 = vmatpush.msra.mxu0 0.0
  %32 = vmatpush.msra.mxu0 0.0
  %33 = vmatpush.msra.mxu0 0.0
  %34 = vmatpush.msra.mxu0 0.0
  %35 = vmatpush.msra.mxu0 0.0
  %36 = vmatpush.msra.mxu0 0.0
  %37 = vmatpush.msra.mxu0 0.0
  %38 = vmatpush.msra.mxu0 %v21
  %39 = vmatpush.msra.mxu0 %v20
  %40 = vmatpush.msra.mxu0 %v19
  %41 = vmatpush.msra.mxu0 %v18
  %42 = vmatmul.f32.gmra.mxu0 %v24
  %v43 = vpop.f32.mrf.mxu0
  %v44 = vadd.f32 0.0, %v43
  %45 = vdwg.mxu0
  %v46 = vld [vmem:[%s1] sm:$0xff]
  %v47 = vld [vmem:[%s3] sm:$0xff]
  %v48 = vld [vmem:[%s3 + $0x8] sm:$0xff]
  %vm49 = vcmask 130048
  %v51 = vsel %vm49, %v46, 0
  %53 = vmatpush.msra.mxu0 0.0
  %54 = vmatpush.msra.mxu0 0.0
  %55 = vmatpush.msra.mxu0 0.0
  %56 = vmatpush.msra.mxu0 0.0
  %57 = vmatpush.msra.mxu0 0.0
  %58 = vmatpush.msra.mxu0 0.0
  %59 = vmatpush.msra.mxu0 0.0
  %60 = vmatpush.msra.mxu0 0.0
  %61 = vmatpush.msra.mxu0 0.0
  %62 = vmatpush.msra.mxu0 0.0
  %63 = vmatpush.msra.mxu0 0.0
  %64 = vmatpush.msra.mxu0 0.0
  %65 = vmatpush.msra.mxu0 0.0
  %66 = vmatpush.msra.mxu0 0.0
  %67 = vmatpush.msra.mxu0 %v48
  %68 = vmatpush.msra.mxu0 %v47
  %69 = vmatmul.f32.gmra.mxu0 %v51
  %v70 = vpop.f32.mrf.mxu0
  %v71 = vadd.f32 0.0, %v70
  %72 = vdwg.mxu0
  %v73 = vtanh.pop %v44
  %v74 = vtanh.pop %v71
  %76 = vrot.lane.b32.xlu0 %v74, 8
  %v77 = vpop.permute.xlu0 %76
  %vm79 = vcmask 64512
  %v80 = vsel %vm79, %v73, %v77
  %81 = vxpose.xlu0.b32.start [1/16] %v80, 128
  %82 = vxpose.xlu0.b32.cont [2/16] 0.0, 128
  %83 = vxpose.xlu0.b32.cont [3/16] 0.0, 128
  %84 = vxpose.xlu0.b32.cont [4/16] 0.0, 128
  %85 = vxpose.xlu0.b32.cont [5/16] 0.0, 128
  %86 = vxpose.xlu0.b32.cont [6/16] 0.0, 128
  %87 = vxpose.xlu0.b32.cont [7/16] 0.0, 128
  %88 = vxpose.xlu0.b32.cont [8/16] 0.0, 128
  %89 = vxpose.xlu0.b32.cont [9/16] 0.0, 128
  %90 = vxpose.xlu0.b32.cont [10/16] 0.0, 128
  %91 = vxpose.xlu0.b32.cont [11/16] 0.0, 128
  %92 = vxpose.xlu0.b32.cont [12/16] 0.0, 128
  %93 = vxpose.xlu0.b32.cont [13/16] 0.0, 128
  %94 = vxpose.xlu0.b32.cont [14/16] 0.0, 128
  %95 = vxpose.xlu0.b32.cont [15/16] 0.0, 128
  %96 = vxpose.xlu0.b32.end [16/16] 0.0, 128
  %v97 = vpop.trf.xlu0
  %v98 = vpop.trf.xlu0
  %v99 = vpop.trf.xlu0
  %v100 = vpop.trf.xlu0
  %v101 = vpop.trf.xlu0
  %v102 = vpop.trf.xlu0
  %v103 = vpop.trf.xlu0
  %v104 = vpop.trf.xlu0
  %v105 = vpop.trf.xlu0
  %v106 = vpop.trf.xlu0
  %v107 = vpop.trf.xlu0
  %v108 = vpop.trf.xlu0
  %v109 = vpop.trf.xlu0
  %v110 = vpop.trf.xlu0
  %v111 = vpop.trf.xlu0
  %v112 = vpop.trf.xlu0
  %113 = vst.msk [vmem:[%s4] sm:$0xff] %vm79, %v97
  %114 = vst.msk [vmem:[%s4 + $0x8] sm:$0xff] %vm79, %v98
  // Predicated region
  $region18: #{tpu_custom_call.1} parent=0 // pred_check
    _
  $region19: #{tpu_custom_call.1} parent=0 // pred_check_branch
    %116 = sbr.rel (0) target = $region21
  $region20: #{tpu_custom_call.1} parent=0 // pred_region
    _
  $region21: #{tpu_custom_call.1} parent=0 // pred_fallthru
    _
  // Predicated region
  $region22: #{tpu_custom_call.1} parent=0 // pred_check
    _
  $region23: #{tpu_custom_call.1} parent=0 // pred_check_branch
    %118 = sbr.rel (0) target = $region25
  $region24: #{tpu_custom_call.1} parent=0 // pred_region
    _
  $region25: #{tpu_custom_call.1} parent=0 // pred_fallthru
    _

</llo_original>
